<compile_context>
chip_gen: v7x
topology: tpu7x:2x2x1
jax: 0.10.0
libtpu: 0.0.40
codegen_flags: <defaults>
</compile_context>

<pallas_src>
import jax
import jax.numpy as jnp
from jax.experimental import pallas as pl
from jax.experimental.pallas import tpu as pltpu

_LANE = 128


def _make_channel_attention_kernel(hw_true: int, hw_tile: int, mask_needed: bool):
    """Builds the kernel closure over static sizes."""
    n_chunks = hw_tile // _LANE

    def kernel(x_ref, w1_ref, w2_ref, o_ref, sum_acc, max_acc):
        # x_ref  : (1, C, hw_tile)  input dtype (bf16/f32), current batch b, hw tile h
        # w1_ref : (C, C_r) f32     fc1 weight, pre-transposed
        # w2_ref : (C_r, C) f32     fc2 weight, pre-transposed
        # o_ref  : (1, 1, C) f32    sigmoid attention for batch b
        # sum_acc/max_acc : (1, C, 128) f32 VMEM scratch (lane-wise partial reductions)
        h = pl.program_id(1)

        @pl.when(h == 0)
        def _init():
            sum_acc[...] = jnp.zeros_like(sum_acc)
            max_acc[...] = jnp.full_like(max_acc, -jnp.inf)

        # Upcast this tile only (input may be bf16).
        x = x_ref[...].astype(jnp.float32)                       # (1, C, hw_tile)

        # Elementwise (VPU) accumulation into 128-lane partials; no XLU work here.
        s = sum_acc[...]
        m = max_acc[...]
        if mask_needed:
            lane_ids = jax.lax.broadcasted_iota(jnp.int32, (1, 1, _LANE), 2)
            base = h * hw_tile
        for i in range(n_chunks):                                # small, static unroll
            chunk = x[:, :, i * _LANE:(i + 1) * _LANE]           # (1, C, 128)
            if mask_needed:
                valid = (base + i * _LANE + lane_ids) < hw_true  # mask padded lanes
                s = s + jnp.where(valid, chunk, 0.0)
                m = jnp.maximum(m, jnp.where(valid, chunk, -jnp.inf))
            else:
                s = s + chunk
                m = jnp.maximum(m, chunk)
        sum_acc[...] = s
        max_acc[...] = m

        @pl.when(h == pl.num_programs(1) - 1)
        def _finalize():
            # One cross-lane reduce each, then a single stacked FC1/FC2.
            avg = jnp.sum(sum_acc[...], axis=-1) * (1.0 / hw_true)   # (1, C)
            mx = jnp.max(max_acc[...], axis=-1)                      # (1, C)
            pooled = jnp.concatenate([avg, mx], axis=0)              # (2, C)

            hid = jnp.maximum(
                jnp.dot(pooled, w1_ref[...],
                        preferred_element_type=jnp.float32), 0.0)    # (2, C_r)
            out2 = jnp.dot(hid, w2_ref[...],
                           preferred_element_type=jnp.float32)       # (2, C)
            out = out2[0:1, :] + out2[1:2, :]                        # (1, C)
            o_ref[...] = jax.nn.sigmoid(out).reshape(o_ref.shape)

    return kernel


def channel_attention(x_nchw, w1, w2, hw_tile=None):
    """x_nchw: (B, C, H, W) (f32 or bf16); w1: (C_r, C, 1, 1); w2: (C, C_r, 1, 1).
    Returns sigmoid channel attention of shape (B, C, 1, 1), matching the torch module."""
    B, C, H, W = x_nchw.shape
    C_r = w1.shape[0]
    hw = H * W

    if hw_tile is None:
        # Pad HW up to a lane multiple; cap the tile so large inputs stream in blocks.
        hw_tile = min(pl.cdiv(hw, _LANE) * _LANE, 2048)
    assert hw_tile % _LANE == 0
    num_hw = pl.cdiv(hw, hw_tile)
    hw_pad = num_hw * hw_tile
    mask_needed = hw_pad != hw

    # Keep input dtype (no force-cast): kernel upcasts per tile.
    x3 = x_nchw.reshape(B, C, hw)
    if mask_needed:
        x3 = jnp.pad(x3, ((0, 0), (0, 0), (0, hw_pad - hw)))

    # Pre-transpose the tiny weights in the wrapper (no in-kernel .T).
    w1t = w1.reshape(C_r, C).astype(jnp.float32).T    # (C, C_r)
    w2t = w2.reshape(C, C_r).astype(jnp.float32).T    # (C_r, C)

    kernel = _make_channel_attention_kernel(hw, hw_tile, mask_needed)

    out = pl.pallas_call(
        kernel,
        out_shape=jax.ShapeDtypeStruct((B, 1, C), jnp.float32),
        grid=(B, num_hw),
        in_specs=[
            pl.BlockSpec((1, C, hw_tile), lambda b, h: (b, 0, h)),
            pl.BlockSpec((C, C_r), lambda b, h: (0, 0)),   # weights resident in VMEM
            pl.BlockSpec((C_r, C), lambda b, h: (0, 0)),
        ],
        out_specs=pl.BlockSpec((1, 1, C), lambda b, h: (b, 0, 0)),
        scratch_shapes=[
            pltpu.VMEM((1, C, _LANE), jnp.float32),   # sum accumulator
            pltpu.VMEM((1, C, _LANE), jnp.float32),   # max accumulator
        ],
        compiler_params=pltpu.CompilerParams(
            dimension_semantics=("parallel", "arbitrary"),
            vmem_limit_bytes=32 * 1024 * 1024,
        ),
    )(x3, w1t, w2t)

    return out.reshape(B, C, 1, 1)


def _reference(x, w1, w2):
    # Pure-JAX reference mirroring the PyTorch forward.
    w1m = w1.reshape(w1.shape[0], w1.shape[1])
    w2m = w2.reshape(w2.shape[0], w2.shape[1])
    avg = jnp.mean(x.astype(jnp.float32), axis=(2, 3))          # (B, C)
    mx = jnp.max(x.astype(jnp.float32), axis=(2, 3))            # (B, C)
    f = lambda v: (jnp.maximum(v @ w1m.T, 0.0)) @ w2m.T
    return jax.nn.sigmoid(f(avg) + f(mx)).reshape(x.shape[0], x.shape[1], 1, 1)


if __name__ == "__main__":
    B, C, H, W = 2, 8, 16, 16
    ratio = 4
    C_r = C // ratio

    key = jax.random.PRNGKey(0)
    kx, k1, k2 = jax.random.split(key, 3)

    x = jax.random.normal(kx, (B, C, H, W), dtype=jnp.float32)
    # Conv2d(C, C_r, 1, bias=False): (C_r, C, 1, 1); Conv2d(C_r, C, 1, bias=False): (C, C_r, 1, 1)
    w1 = jax.random.normal(k1, (C_r, C, 1, 1), dtype=jnp.float32) * 0.5
    w2 = jax.random.normal(k2, (C, C_r, 1, 1), dtype=jnp.float32) * 0.5

    # hw_tile=128 forces a multi-step HW grid (2 steps) to exercise the
    # accumulate + pl.when finalize path at this small test size.
    out = channel_attention(x, w1, w2, hw_tile=128)
    out = jax.block_until_ready(out)

    ref = _reference(x, w1, w2)
    assert out.shape == (B, C, 1, 1)
    assert jnp.allclose(out, ref, atol=1e-5, rtol=1e-5), "mismatch vs reference"

    print("KERNEL_OK")
</pallas_src>

<mosaic_0001>
module attributes {stable_mosaic.version = 11 : i64} {
  func.func @kernel(%arg0: i32, %arg1: i32, %arg2: memref<1x8x128xf32, #tpu.memory_space<vmem>>, %arg3: memref<8x2xf32, #tpu.memory_space<vmem>>, %arg4: memref<2x8xf32, #tpu.memory_space<vmem>>, %arg5: memref<1x1x8xf32, #tpu.memory_space<vmem>>, %arg6: memref<1x8x128xf32, #tpu.memory_space<vmem>>, %arg7: memref<1x8x128xf32, #tpu.memory_space<vmem>>) attributes {dimension_semantics = [#tpu.dimension_semantics<parallel>, #tpu.dimension_semantics<arbitrary>], iteration_bounds = array<i64: 2, 2>, scalar_prefetch = 0 : i64, scratch_operands = 2 : i64, tpu.core_type = #tpu.core_type<tc>, window_params = [{transform_indices = @transform_0, window_bounds = array<i64: 1, 8, 128>}, {pipeline_mode = #tpu.pipeline_mode<synchronous>, transform_indices = @transform_1, window_bounds = array<i64: 8, 2>}, {pipeline_mode = #tpu.pipeline_mode<synchronous>, transform_indices = @transform_2, window_bounds = array<i64: 2, 8>}, {transform_indices = @transform_3, window_bounds = array<i64: 1, 1, 8>}]} {
    %c0_i32 = arith.constant 0 : i32
    %0 = arith.cmpi eq, %arg1, %c0_i32 : i32
    %1 = arith.extui %0 : i1 to i32
    %c0_i32_0 = arith.constant 0 : i32
    %2 = arith.cmpi ne, %1, %c0_i32_0 : i32
    scf.if %2 {
      %cst = arith.constant 0.000000e+00 : f32
      %13 = vector.broadcast %cst : f32 to vector<1x8x128xf32>
      %c0_16 = arith.constant 0 : index
      %c0_17 = arith.constant 0 : index
      %c0_18 = arith.constant 0 : index
      %14 = vector.load %arg6[%c0_16, %c0_17, %c0_18] : memref<1x8x128xf32, #tpu.memory_space<vmem>>, vector<1x8x128xf32>
      tpu.vector_store %arg6[%c0_16, %c0_17, %c0_18], %13 {strides = array<i32>} : memref<1x8x128xf32, #tpu.memory_space<vmem>>, vector<1x8x128xf32>,
      %cst_19 = arith.constant 0xFF800000 : f32
      %15 = vector.broadcast %cst_19 : f32 to vector<1x8x128xf32>
      %c0_20 = arith.constant 0 : index
      %c0_21 = arith.constant 0 : index
      %c0_22 = arith.constant 0 : index
      %16 = vector.load %arg7[%c0_20, %c0_21, %c0_22] : memref<1x8x128xf32, #tpu.memory_space<vmem>>, vector<1x8x128xf32>
      tpu.vector_store %arg7[%c0_20, %c0_21, %c0_22], %15 {strides = array<i32>} : memref<1x8x128xf32, #tpu.memory_space<vmem>>, vector<1x8x128xf32>,
    } else {
    }
    %c0 = arith.constant 0 : index
    %c0_1 = arith.constant 0 : index
    %c0_2 = arith.constant 0 : index
    %3 = vector.load %arg2[%c0, %c0_1, %c0_2] : memref<1x8x128xf32, #tpu.memory_space<vmem>>, vector<1x8x128xf32>
    %c0_3 = arith.constant 0 : index
    %c0_4 = arith.constant 0 : index
    %c0_5 = arith.constant 0 : index
    %4 = vector.load %arg6[%c0_3, %c0_4, %c0_5] : memref<1x8x128xf32, #tpu.memory_space<vmem>>, vector<1x8x128xf32>
    %c0_6 = arith.constant 0 : index
    %c0_7 = arith.constant 0 : index
    %c0_8 = arith.constant 0 : index
    %5 = vector.load %arg7[%c0_6, %c0_7, %c0_8] : memref<1x8x128xf32, #tpu.memory_space<vmem>>, vector<1x8x128xf32>
    %6 = arith.addf %4, %3 : vector<1x8x128xf32>
    %7 = arith.maximumf %5, %3 : vector<1x8x128xf32>
    %c0_9 = arith.constant 0 : index
    %c0_10 = arith.constant 0 : index
    %c0_11 = arith.constant 0 : index
    %8 = vector.load %arg6[%c0_9, %c0_10, %c0_11] : memref<1x8x128xf32, #tpu.memory_space<vmem>>, vector<1x8x128xf32>
    tpu.vector_store %arg6[%c0_9, %c0_10, %c0_11], %6 {strides = array<i32>} : memref<1x8x128xf32, #tpu.memory_space<vmem>>, vector<1x8x128xf32>,
    %c0_12 = arith.constant 0 : index
    %c0_13 = arith.constant 0 : index
    %c0_14 = arith.constant 0 : index
    %9 = vector.load %arg7[%c0_12, %c0_13, %c0_14] : memref<1x8x128xf32, #tpu.memory_space<vmem>>, vector<1x8x128xf32>
    tpu.vector_store %arg7[%c0_12, %c0_13, %c0_14], %7 {strides = array<i32>} : memref<1x8x128xf32, #tpu.memory_space<vmem>>, vector<1x8x128xf32>,
    %c1_i32 = arith.constant 1 : i32
    %10 = arith.cmpi eq, %arg1, %c1_i32 : i32
    %11 = arith.extui %10 : i1 to i32
    %c0_i32_15 = arith.constant 0 : i32
    %12 = arith.cmpi ne, %11, %c0_i32_15 : i32
    scf.if %12 {
      %c0_16 = arith.constant 0 : index
      %c0_17 = arith.constant 0 : index
      %c0_18 = arith.constant 0 : index
      %13 = vector.load %arg6[%c0_16, %c0_17, %c0_18] : memref<1x8x128xf32, #tpu.memory_space<vmem>>, vector<1x8x128xf32>
      %cst = arith.constant dense<0.000000e+00> : vector<1x8xf32>
      %14 = vector.multi_reduction <add>, %13, %cst [2] : vector<1x8x128xf32> to vector<1x8xf32>
      %cst_19 = arith.constant 3.906250e-03 : f32
      %15 = vector.broadcast %cst_19 : f32 to vector<1x8xf32>
      %16 = arith.mulf %14, %15 : vector<1x8xf32>
      %c0_20 = arith.constant 0 : index
      %c0_21 = arith.constant 0 : index
      %c0_22 = arith.constant 0 : index
      %17 = vector.load %arg7[%c0_20, %c0_21, %c0_22] : memref<1x8x128xf32, #tpu.memory_space<vmem>>, vector<1x8x128xf32>
      %cst_23 = arith.constant dense<0xFF800000> : vector<1x8xf32>
      %18 = vector.multi_reduction <maximumf>, %17, %cst_23 [2] : vector<1x8x128xf32> to vector<1x8xf32>
      %19 = tpu.concatenate %16, %18 in 0 : vector<1x8xf32>, vector<1x8xf32> -> vector<2x8xf32>
      %c0_24 = arith.constant 0 : index
      %c0_25 = arith.constant 0 : index
      %20 = vector.load %arg3[%c0_24, %c0_25] : memref<8x2xf32, #tpu.memory_space<vmem>>, vector<8x2xf32>
      %cst_26 = arith.constant dense<0.000000e+00> : vector<2x2xf32>
      %21 = tpu.matmul %19, %20, %cst_26 {dimension_numbers = #tpu.dot_dimension_numbers<[1], [0], [0], [1], [0, 0, 1, 1], [], []>} : vector<2x8xf32>, vector<8x2xf32>, vector<2x2xf32> -> vector<2x2xf32>
      %cst_27 = arith.constant 0.000000e+00 : f32
      %22 = vector.broadcast %cst_27 : f32 to vector<2x2xf32>
      %23 = arith.maximumf %21, %22 : vector<2x2xf32>
      %c0_28 = arith.constant 0 : index
      %c0_29 = arith.constant 0 : index
      %24 = vector.load %arg4[%c0_28, %c0_29] : memref<2x8xf32, #tpu.memory_space<vmem>>, vector<2x8xf32>
      %cst_30 = arith.constant dense<0.000000e+00> : vector<2x8xf32>
      %25 = tpu.matmul %23, %24, %cst_30 {dimension_numbers = #tpu.dot_dimension_numbers<[1], [0], [0], [1], [0, 0, 1, 1], [], []>} : vector<2x2xf32>, vector<2x8xf32>, vector<2x8xf32> -> vector<2x8xf32>
      %26 = vector.extract_strided_slice %25 {offsets = [0, 0], sizes = [1, 8], strides = [1, 1]} : vector<2x8xf32> to vector<1x8xf32>
      %27 = vector.extract_strided_slice %25 {offsets = [1, 0], sizes = [1, 8], strides = [1, 1]} : vector<2x8xf32> to vector<1x8xf32>
      %28 = arith.addf %26, %27 : vector<1x8xf32>
      %29 = arith.negf %28 : vector<1x8xf32>
      %30 = math.exp %29 : vector<1x8xf32>
      %cst_31 = arith.constant 1.000000e+00 : f32
      %31 = vector.broadcast %cst_31 : f32 to vector<1x8xf32>
      %32 = arith.addf %31, %30 : vector<1x8xf32>
      %33 = arith.divf %31, %32 : vector<1x8xf32>
      %34 = vector.shape_cast %33 : vector<1x8xf32> to vector<1x1x8xf32>
      %c0_32 = arith.constant 0 : index
      %c0_33 = arith.constant 0 : index
      %c0_34 = arith.constant 0 : index
      %35 = vector.load %arg5[%c0_32, %c0_33, %c0_34] : memref<1x1x8xf32, #tpu.memory_space<vmem>>, vector<1x1x8xf32>
      tpu.vector_store %arg5[%c0_32, %c0_33, %c0_34], %34 {strides = array<i32>} : memref<1x1x8xf32, #tpu.memory_space<vmem>>, vector<1x1x8xf32>,
    } else {
    }
    return
  }
  func.func @transform_0(%arg0: i32, %arg1: i32) -> (i32, i32, i32) {
    %c0_i32 = arith.constant 0 : i32
    %c0_i32_0 = arith.constant 0 : i32
    return %arg0, %c0_i32, %arg1 : i32, i32, i32
  }
  func.func @transform_1(%arg0: i32, %arg1: i32) -> (i32, i32) {
    %c0_i32 = arith.constant 0 : i32
    %c0_i32_0 = arith.constant 0 : i32
    %c0_i32_1 = arith.constant 0 : i32
    return %c0_i32, %c0_i32_0 : i32, i32
  }
  func.func @transform_2(%arg0: i32, %arg1: i32) -> (i32, i32) {
    %c0_i32 = arith.constant 0 : i32
    %c0_i32_0 = arith.constant 0 : i32
    %c0_i32_1 = arith.constant 0 : i32
    return %c0_i32, %c0_i32_0 : i32, i32
  }
  func.func @transform_3(%arg0: i32, %arg1: i32) -> (i32, i32, i32) {
    %c0_i32 = arith.constant 0 : i32
    %c0_i32_0 = arith.constant 0 : i32
    %c0_i32_1 = arith.constant 0 : i32
    return %arg0, %c0_i32, %c0_i32_0 : i32, i32, i32
  }
}

</mosaic_0001>

<llo_original>
// kernel: tpu_custom_call.1
$region0: #{tpu_custom_call.1}
  #allocation0 [shape = 'u32[]', space=smem, size = 0x4, offset = 0x4, fixed_abs, tag = 'smem constant byte address 0x4 - core index']
  #allocation1 [shape = 'u32[144,128]{1,0:T(1,128)}', space=vmem, size = 0x12000, scoped, tag = 'internal scratch']
  #allocation2 [shape = 'f32[1,8,128]{2,1,0:T(8,128)}', space=vmem, size = 0x1000, scoped, tag = 'scratch operand']
  #allocation3 [shape = 'f32[1,8,128]{2,1,0:T(8,128)}', space=vmem, size = 0x1000, scoped, tag = 'scratch operand']
  %s0 = inlined_call_operand.hbm [shape: f32[2,8,256], index: 0, kind: input, shape index: {}]
  %s1 = inlined_call_operand.vmem [shape: f32[8,2], index: 1, kind: input, shape index: {}]
  %s2 = inlined_call_operand.vmem [shape: f32[2,8], index: 2, kind: input, shape index: {}]
  %s3 = inlined_call_operand.hbm [shape: f32[2,1,8], index: 3, kind: output, shape index: {}]
  %s4 = sld [smem:[#allocation0]]
  $region57: #{tpu_custom_call.1} parent=0
    _
  %s6 = ssub.s32 1, %s4
  %s7 = scalar_select 0, %s6, %s4
  $region1: #{tpu_custom_call.1} parent=0
    #allocation4 [shape = 'u8[8192]{0}', space=vmem, size = 0x2000, scoped, tag = 'input window, operand 0']
    #allocation5 [shape = 's32[2]{0}', space=sflag, size = 0x8, scoped, tag = 'scoped memory for tpu_custom_call.1']
    #allocation6 [shape = 's32[2]{0}', space=sflag, size = 0x8, scoped, tag = 'scoped memory for tpu_custom_call.1']
    #allocation7 [shape = 'u8[1024]{0}', space=vmem, size = 0x400, scoped, tag = 'output window, operand 0']
    %8 = vsyncpa [#allocation5], 0
    %s9 = scalar_lea.sflag [#allocation5], 1
    %10 = vsyncpa %s9, 0
    %11 = vsyncpa [#allocation6], 0
    %s12 = scalar_lea.sflag [#allocation6], 1
    %13 = vsyncpa %s12, 0
    loop: start=0, step=1, limit=6
    $region2: #{tpu_custom_call.1} parent=1 // loop_pre_header
      _
    $region3: #{tpu_custom_call.1} parent=1 // loop_header
      %s15 = sphi 0, %s19
      %p16 = scmp.ge.s32.totalorder %s15, 6
      %s22 = sphi 0, %s34
      %s23 = sphi 0, %s30
      %s24 = sphi 0, %s22
      %s25 = sphi 0, %s23
      %s26 = sphi 0, %s24
      %s27 = sphi 0, %s25
      %s39 = sphi 0, %s41
      %s42 = sphi 0, %s39
      %s43 = sphi 0, %s42
      %s59 = sphi 0, %s43
      %s63 = sphi 0, %s63
      %s65 = sphi 0, %s63
      %s66 = sphi 0, %s65
      %s80 = sphi 0, %s66
      %s84 = sphi 0, %s84
      %s86 = sphi 0, %s84
      %s87 = sphi 0, %s86
      %s101 = sphi 0, %s87
      %s107 = sphi 0, %s109
      %s110 = sphi 0, %s107
      %s111 = sphi 0, %s110
      %s127 = sphi 0, %s111
    $region4: #{tpu_custom_call.1} parent=1 // loop_header_branch
      %18 = sbr.rel (%p16) target = $region8
    $region5: #{tpu_custom_call.1} parent=1 // loop_body
      %s20 = ssub.s32 %s15, 1
      %s21 = ssub.s32 %s15, 2
      %s28 = sadd.s32 1, %s23
      %p29 = scmp.ge.s32.totalorder %s28, 2
      %s30 = scalar_select %p29, 0, %s28
      %s31 = sadd.s32 1, %s22
      %s32 = scalar_select %p29, %s31, %s22
      %p33 = scmp.ge.s32.totalorder %s32, 2
      %s34 = scalar_select %p33, 0, %s32
      %s35 = ssub.s32 %s22, %s34
      %s36 = ssub.s32 %s23, %s30
      %s37 = sor.u32 %s35, %s36
      %p38 = scmp.eq.s32.totalorder %s37, 0
      %s40 = sadd.s32 %s39, 1
      %s41 = scalar_select %p38, %s39, %s40
      %p44 = pneg %p38
      %p45 = scmp.eq.s32.totalorder %s15, 3
      %p46 = por %p44, %p45
      %p47 = scmp.ne.s32.totalorder %s39, %s42
      %p48 = scmp.eq.s32.totalorder %s15, 0
      %p49 = por %p47, %p48
      %p50 = scmp.ne.s32.totalorder %s39, %s42
      %p51 = scmp.eq.s32.totalorder %s20, 3
      %p52 = por %p50, %p51
      %p53 = scmp.ne.s32.totalorder %s42, %s43
      %p54 = scmp.eq.s32.totalorder %s20, 0
      %p55 = por %p53, %p54
      %p56 = scmp.ne.s32.totalorder %s42, %s43
      %p57 = scmp.eq.s32.totalorder %s21, 3
      %p58 = por %p56, %p57
      %p60 = scmp.ne.s32.totalorder %s43, %s59
      %p61 = scmp.eq.s32.totalorder %s21, 0
      %p62 = por %p60, %p61
      %s64 = sadd.s32 %s63, 1
      %p67 = scmp.eq.s32.totalorder %s15, 3
      %p68 = scmp.ne.s32.totalorder %s63, %s65
      %p69 = scmp.eq.s32.totalorder %s15, 0
      %p70 = por %p68, %p69
      %p71 = scmp.ne.s32.totalorder %s63, %s65
      %p72 = scmp.eq.s32.totalorder %s20, 3
      %p73 = por %p71, %p72
      %p74 = scmp.ne.s32.totalorder %s65, %s66
      %p75 = scmp.eq.s32.totalorder %s20, 0
      %p76 = por %p74, %p75
      %p77 = scmp.ne.s32.totalorder %s65, %s66
      %p78 = scmp.eq.s32.totalorder %s21, 3
      %p79 = por %p77, %p78
      %p81 = scmp.ne.s32.totalorder %s66, %s80
      %p82 = scmp.eq.s32.totalorder %s21, 0
      %p83 = por %p81, %p82
      %s85 = sadd.s32 %s84, 1
      %p88 = scmp.eq.s32.totalorder %s15, 3
      %p89 = scmp.ne.s32.totalorder %s84, %s86
      %p90 = scmp.eq.s32.totalorder %s15, 0
      %p91 = por %p89, %p90
      %p92 = scmp.ne.s32.totalorder %s84, %s86
      %p93 = scmp.eq.s32.totalorder %s20, 3
      %p94 = por %p92, %p93
      %p95 = scmp.ne.s32.totalorder %s86, %s87
      %p96 = scmp.eq.s32.totalorder %s20, 0
      %p97 = por %p95, %p96
      %p98 = scmp.ne.s32.totalorder %s86, %s87
      %p99 = scmp.eq.s32.totalorder %s21, 3
      %p100 = por %p98, %p99
      %p102 = scmp.ne.s32.totalorder %s87, %s101
      %p103 = scmp.eq.s32.totalorder %s21, 0
      %p104 = por %p102, %p103
      %s105 = ssub.s32 %s22, %s34
      %p106 = scmp.eq.s32.totalorder %s105, 0
      %s108 = sadd.s32 %s107, 1
      %s109 = scalar_select %p106, %s107, %s108
      %p112 = pneg %p106
      %p113 = scmp.eq.s32.totalorder %s15, 3
      %p114 = por %p112, %p113
      %p115 = scmp.ne.s32.totalorder %s107, %s110
      %p116 = scmp.eq.s32.totalorder %s15, 0
      %p117 = por %p115, %p116
      %p118 = scmp.ne.s32.totalorder %s107, %s110
      %p119 = scmp.eq.s32.totalorder %s20, 3
      %p120 = por %p118, %p119
      %p121 = scmp.ne.s32.totalorder %s110, %s111
      %p122 = scmp.eq.s32.totalorder %s20, 0
      %p123 = por %p121, %p122
      %p124 = scmp.ne.s32.totalorder %s110, %s111
      %p125 = scmp.eq.s32.totalorder %s21, 3
      %p126 = por %p124, %p125
      %p128 = scmp.ne.s32.totalorder %s111, %s127
      %p129 = scmp.eq.s32.totalorder %s21, 0
      %p130 = por %p128, %p129
      %p131 = scmp.le.s32.totalorder 1, %s15
      %p132 = scmp.lt.s32.totalorder %s15, 5
      %p133 = pnand %p131, %p132
      %p134 = pneg %p133
      // Predicated region
      $region9: #{tpu_custom_call.1} parent=5 // pred_check
        _
      $region10: #{tpu_custom_call.1} parent=5 // pred_check_branch
        %136 = sbr.rel (%p133) target = $region12
      $region11: #{tpu_custom_call.1} parent=5 // pred_region
        %s137 = ssub.s32 %s15, 1
        // Predicated region
        $region13: #{tpu_custom_call.1} parent=11 // pred_check
          %p138 = pneg %p76
        $region14: #{tpu_custom_call.1} parent=11 // pred_check_branch
          %140 = sbr.rel (%p138) target = $region16
        $region15: #{tpu_custom_call.1} parent=11 // pred_region
          _
        $region16: #{tpu_custom_call.1} parent=11 // pred_fallthru
          _
        // Predicated region
        $region17: #{tpu_custom_call.1} parent=11 // pred_check
          %p141 = pneg %p97
        $region18: #{tpu_custom_call.1} parent=11 // pred_check_branch
          %143 = sbr.rel (%p141) target = $region20
        $region19: #{tpu_custom_call.1} parent=11 // pred_region
          _
        $region20: #{tpu_custom_call.1} parent=11 // pred_fallthru
          _
      $region12: #{tpu_custom_call.1} parent=5 // pred_fallthru
        _
      %p144 = scmp.lt.s32.totalorder %s15, 4
      // Predicated region
      $region21: #{tpu_custom_call.1} parent=5 // pred_check
        %p145 = pneg %p144
      $region22: #{tpu_custom_call.1} parent=5 // pred_check_branch
        %147 = sbr.rel (%p145) target = $region24
      $region23: #{tpu_custom_call.1} parent=5 // pred_region
        // Predicated region
        $region25: #{tpu_custom_call.1} parent=23 // pred_check
          %p148 = pneg %p49
        $region26: #{tpu_custom_call.1} parent=23 // pred_check_branch
          %150 = sbr.rel (%p148) target = $region28
        $region27: #{tpu_custom_call.1} parent=23 // pred_region
          %s151 = sand.u32 %s39, 1
          %s152 = scalar_lea.sflag [#allocation5], %s151
          %s153 = sand.u32 %s39, 1
          %s154 = smul.addr %s153, 8
          %s155 = scalar_lea.vmem [#allocation4], %s154
          %s157 = ssub.s32 128, 128
          %158 = vsyncadd %s152, %s157
          %s159 = smul.addr %s22, 2
          %s160 = sadd.s32 %s23, %s159
          %s161 = smul.addr %s160, 128
          %s162 = scalar_lea.hbm %s0, %s161
          %s164 = sshll.u32 %s155, 4
          %s165 = int_to_ptr.vmem [resolvable:$true] %s164
          %167 = dma.hbm_to_vmem [thread:$0]  %s162, 128, %s165, %s152
        $region28: #{tpu_custom_call.1} parent=23 // pred_fallthru
          _
      $region24: #{tpu_custom_call.1} parent=5 // pred_fallthru
        _
      %p168 = scmp.le.s32.totalorder 1, %s15
      %p169 = scmp.lt.s32.totalorder %s15, 5
      %p170 = pnand %p168, %p169
      %p171 = pneg %p170
      // Predicated region
      $region29: #{tpu_custom_call.1} parent=5 // pred_check
        _
      $region30: #{tpu_custom_call.1} parent=5 // pred_check_branch
        %173 = sbr.rel (%p170) target = $region32
      $region31: #{tpu_custom_call.1} parent=5 // pred_region
        %s174 = ssub.s32 %s15, 1
        %s175 = sand.u32 %s42, 1
        %s176 = scalar_lea.sflag [#allocation5], %s175
        %s177 = sand.u32 %s42, 1
        %s178 = smul.addr %s177, 8
        %s179 = scalar_lea.vmem [#allocation4], %s178
        // Predicated region
        $region33: #{tpu_custom_call.1} parent=31 // pred_check
          %p180 = pneg %p55
        $region34: #{tpu_custom_call.1} parent=31 // pred_check_branch
          %182 = sbr.rel (%p180) target = $region36
        $region35: #{tpu_custom_call.1} parent=31 // pred_region
          %183 = dma.done %s176, 128
        $region36: #{tpu_custom_call.1} parent=31 // pred_fallthru
          _
        %s184 = sand.u32 %s42, 1
        %s185 = scalar_lea.sflag [#allocation5], %s184
        %s186 = sand.u32 %s42, 1
        %s187 = smul.addr %s186, 8
        %s188 = scalar_lea.vmem [#allocation4], %s187
        %p189 = pneg %p55
        %p190 = pneg %p52
        %p191 = pneg %p76
        %p192 = pneg %p73
        %p193 = pneg %p97
        %p194 = pneg %p94
        %p195 = pneg %p123
        %p196 = pneg %p120
        %s197 = sand.u32 %s110, 1
        %s198 = scalar_lea.sflag [#allocation6], %s197
        %s199 = sand.u32 %s110, 1
        %s200 = scalar_lea.vmem [#allocation7], %s199
        %p201 = scmp.eq.s32.totalorder %s25, 0
        // Predicated region
        $region37: #{tpu_custom_call.1} parent=31 // pred_check
          %p202 = pneg %p201
        $region38: #{tpu_custom_call.1} parent=31 // pred_check_branch
          %204 = sbr.rel (%p202) target = $region40
        $region39: #{tpu_custom_call.1} parent=31 // pred_region
          %205 = vst [vmem:[#allocation2] sm:$0xff] 0.0
          %206 = vst [vmem:[#allocation3] sm:$0xff] -inf
        $region40: #{tpu_custom_call.1} parent=31 // pred_fallthru
          _
        %v207 = vld [vmem:[%s179] sm:$0xff]
        %v208 = vld [vmem:[#allocation2] sm:$0xff]
        %v209 = vld [vmem:[#allocation3] sm:$0xff]
        %v210 = vadd.f32 %v208, %v207
        %v211 = vmax.f32 %v209, %v207
        %212 = vst [vmem:[#allocation2] sm:$0xff] %v210
        %213 = vst [vmem:[#allocation3] sm:$0xff] %v211
        %p214 = scmp.eq.s32.totalorder %s25, 1
        // Predicated region
        $region41: #{tpu_custom_call.1} parent=31 // pred_check
          %p215 = pneg %p214
        $region42: #{tpu_custom_call.1} parent=31 // pred_check_branch
          %217 = sbr.rel (%p215) target = $region44
        $region43: #{tpu_custom_call.1} parent=31 // pred_region
          %v218 = vld [vmem:[#allocation2] sm:$0xff]
          %219 = vadd.xlane.f32.xlu0 %v218
          %v220 = vpop.xlane.xlu0 %219
          %v221 = vmul.f32 %v220, 0.00390625
          %v222 = vld [vmem:[#allocation3] sm:$0xff]
          %223 = vmax.xlane.f32.xlu0 %v222
          %v224 = vpop.xlane.xlu0 %223
          %v226 = vlaneseq
          %v227 = vand.u32 %v226, 127
          %v228 = vlaneseq
          %v229 = vshrl.u32 %v228, 7
          %v230 = vsub.s32 %v227, %v229
          %v231 = vrot.slane %v221, %v230
          %v234 = vlaneseq
          %v235 = vshrl.u32 %v234, 7
          %v236 = vsub.s32 %v227, %v235
          %v237 = vrot.slane %v224, %v236
          %vm239 = vcmask 1040384
          %v240 = vsel %vm239, %v231, %v237
          %v241 = vld [vmem:[%s1] sm:$0xff]
          %vm242 = vcmask 64512
          %v244 = vsel %vm242, %v240, 0
          %246 = vmatprep.subr.mxu0 0.0
          %247 = vmatpush1.msra.mxu0 %v241
          %248 = vmatprep.subr.mxu0 0.0
          %249 = vmatpush1.msra.mxu0 0.0
          %250 = vmatprep.subr.mxu0 0.0
          %251 = vmatpush1.msra.mxu0 0.0
          %252 = vmatprep.subr.mxu0 0.0
          %253 = vmatpush1.msra.mxu0 0.0
          %254 = vmatprep.subr.mxu0 0.0
          %255 = vmatpush1.msra.mxu0 0.0
          %256 = vmatprep.subr.mxu0 0.0
          %257 = vmatpush1.msra.mxu0 0.0
          %258 = vmatprep.subr.mxu0 0.0
          %259 = vmatpush1.msra.mxu0 0.0
          %260 = vmatprep.subr.mxu0 0.0
          %261 = vmatpush1.msra.mxu0 0.0
          %262 = vmatprep.subr.mxu0 0.0
          %263 = vmatpush1.msra.mxu0 0.0
          %264 = vmatprep.subr.mxu0 0.0
          %265 = vmatpush1.msra.mxu0 0.0
          %266 = vmatprep.subr.mxu0 0.0
          %267 = vmatpush1.msra.mxu0 0.0
          %268 = vmatprep.subr.mxu0 0.0
          %269 = vmatpush1.msra.mxu0 0.0
          %270 = vmatprep.subr.mxu0 0.0
          %271 = vmatpush1.msra.mxu0 0.0
          %272 = vmatprep.subr.mxu0 0.0
          %273 = vmatpush1.msra.mxu0 0.0
          %274 = vmatprep.subr.mxu0 0.0
          %275 = vmatpush1.msra.mxu0 0.0
          %276 = vmatprep.subr.mxu0 0.0
          %277 = vmatpush1.msra.mxu0 0.0
          %278 = vmatprep.subr.mxu0 0.0
          %279 = vmatpush1.msra.mxu0 0.0
          %280 = vmatprep.subr.mxu0 0.0
          %281 = vmatpush1.msra.mxu0 0.0
          %282 = vmatprep.subr.mxu0 0.0
          %283 = vmatpush1.msra.mxu0 0.0
          %284 = vmatprep.subr.mxu0 0.0
          %285 = vmatpush1.msra.mxu0 0.0
          %286 = vmatprep.subr.mxu0 0.0
          %287 = vmatpush1.msra.mxu0 0.0
          %288 = vmatprep.subr.mxu0 0.0
          %289 = vmatpush1.msra.mxu0 0.0
          %290 = vmatprep.subr.mxu0 0.0
          %291 = vmatpush1.msra.mxu0 0.0
          %292 = vmatprep.subr.mxu0 0.0
          %293 = vmatpush1.msra.mxu0 0.0
          %294 = vmatprep.subr.mxu0 0.0
          %295 = vmatpush1.msra.mxu0 0.0
          %296 = vmatprep.subr.mxu0 0.0
          %297 = vmatpush1.msra.mxu0 0.0
          %298 = vmatprep.subr.mxu0 0.0
          %299 = vmatpush1.msra.mxu0 0.0
          %300 = vmatprep.subr.mxu0 0.0
          %301 = vmatpush1.msra.mxu0 0.0
          %302 = vmatprep.subr.mxu0 0.0
          %303 = vmatpush1.msra.mxu0 0.0
          %304 = vmatprep.subr.mxu0 0.0
          %305 = vmatpush1.msra.mxu0 0.0
          %306 = vmatprep.subr.mxu0 0.0
          %307 = vmatpush1.msra.mxu0 0.0
          %308 = vmatprep.subr.mxu0 0.0
          %309 = vmatpush1.msra.mxu0 0.0
          %310 = vmatprep.mubr.f32.mxu0 0.0
          %311 = vmatmul.mubr.f32.gmra.mrb[0].mxu0 %v244
          %v312 = vpop.f32.mrb[0].mxu0
          %v313 = vadd.f32 0.0, %v312
          %v314 = vpop.f32.mrb[0].mxu0
          %315 = vdwg.mxu0
          %v316 = vmax.f32 %v313, 0.0
          %v317 = vld [vmem:[%s2] sm:$0x3]
          %vm318 = vcmask 15360
          %v320 = vsel %vm318, %v316, 0
          %vm322 = vcmask 1041408
          %v324 = vsel %vm322, %v317, 0
          %326 = vmatprep.subr.mxu0 0.0
          %327 = vmatpush1.msra.mxu0 %v324
          %328 = vmatprep.subr.mxu0 0.0
          %329 = vmatpush1.msra.mxu0 0.0
          %330 = vmatprep.subr.mxu0 0.0
          %331 = vmatpush1.msra.mxu0 0.0
          %332 = vmatprep.subr.mxu0 0.0
          %333 = vmatpush1.msra.mxu0 0.0
          %334 = vmatprep.subr.mxu0 0.0
          %335 = vmatpush1.msra.mxu0 0.0
          %336 = vmatprep.subr.mxu0 0.0
          %337 = vmatpush1.msra.mxu0 0.0
          %338 = vmatprep.subr.mxu0 0.0
          %339 = vmatpush1.msra.mxu0 0.0
          %340 = vmatprep.subr.mxu0 0.0
          %341 = vmatpush1.msra.mxu0 0.0
          %342 = vmatprep.subr.mxu0 0.0
          %343 = vmatpush1.msra.mxu0 0.0
          %344 = vmatprep.subr.mxu0 0.0
          %345 = vmatpush1.msra.mxu0 0.0
          %346 = vmatprep.subr.mxu0 0.0
          %347 = vmatpush1.msra.mxu0 0.0
          %348 = vmatprep.subr.mxu0 0.0
          %349 = vmatpush1.msra.mxu0 0.0
          %350 = vmatprep.subr.mxu0 0.0
          %351 = vmatpush1.msra.mxu0 0.0
          %352 = vmatprep.subr.mxu0 0.0
          %353 = vmatpush1.msra.mxu0 0.0
          %354 = vmatprep.subr.mxu0 0.0
          %355 = vmatpush1.msra.mxu0 0.0
          %356 = vmatprep.subr.mxu0 0.0
          %357 = vmatpush1.msra.mxu0 0.0
          %358 = vmatprep.subr.mxu0 0.0
          %359 = vmatpush1.msra.mxu0 0.0
          %360 = vmatprep.subr.mxu0 0.0
          %361 = vmatpush1.msra.mxu0 0.0
          %362 = vmatprep.subr.mxu0 0.0
          %363 = vmatpush1.msra.mxu0 0.0
          %364 = vmatprep.subr.mxu0 0.0
          %365 = vmatpush1.msra.mxu0 0.0
          %366 = vmatprep.subr.mxu0 0.0
          %367 = vmatpush1.msra.mxu0 0.0
          %368 = vmatprep.subr.mxu0 0.0
          %369 = vmatpush1.msra.mxu0 0.0
          %370 = vmatprep.subr.mxu0 0.0
          %371 = vmatpush1.msra.mxu0 0.0
          %372 = vmatprep.subr.mxu0 0.0
          %373 = vmatpush1.msra.mxu0 0.0
          %374 = vmatprep.subr.mxu0 0.0
          %375 = vmatpush1.msra.mxu0 0.0
          %376 = vmatprep.subr.mxu0 0.0
          %377 = vmatpush1.msra.mxu0 0.0
          %378 = vmatprep.subr.mxu0 0.0
          %379 = vmatpush1.msra.mxu0 0.0
          %380 = vmatprep.subr.mxu0 0.0
          %381 = vmatpush1.msra.mxu0 0.0
          %382 = vmatprep.subr.mxu0 0.0
          %383 = vmatpush1.msra.mxu0 0.0
          %384 = vmatprep.subr.mxu0 0.0
          %385 = vmatpush1.msra.mxu0 0.0
          %386 = vmatprep.subr.mxu0 0.0
          %387 = vmatpush1.msra.mxu0 0.0
          %388 = vmatprep.subr.mxu0 0.0
          %389 = vmatpush1.msra.mxu0 0.0
          %390 = vmatprep.mubr.f32.mxu0 0.0
          %391 = vmatmul.mubr.f32.gmra.mrb[0].mxu0 %v320
          %v392 = vpop.f32.mrb[0].mxu0
          %v393 = vadd.f32 0.0, %v392
          %v394 = vpop.f32.mrb[0].mxu0
          %395 = vdwg.mxu0
          %v397 = vrot.slane %v393, 1
          %v399 = vadd.f32 %v393, %v397
          %v400 = vxor.u32 %v399, 2147483648
          %v401 = vmul.f32 %v400, 1.442695
          %v402 = vpow.pop %v401
          %v403 = vadd.f32 %v402, 1.0
          %v404 = vrcp.pop %v403
          %v405 = vmul.f32 1.0, %v404
          %vm406 = vcmask 57344
          %407 = vst.msk [vmem:[%s200] sm:$0x1] %vm406, %v405
        $region44: #{tpu_custom_call.1} parent=31 // pred_fallthru
          _
        %s408 = sand.u32 %s110, 1
        %s409 = scalar_lea.sflag [#allocation6], %s408
        %s410 = sand.u32 %s110, 1
        %s411 = scalar_lea.vmem [#allocation7], %s410
        // Predicated region
        $region45: #{tpu_custom_call.1} parent=31 // pred_check
          %p412 = pneg %p120
        $region46: #{tpu_custom_call.1} parent=31 // pred_check_branch
          %414 = sbr.rel (%p412) target = $region48
        $region47: #{tpu_custom_call.1} parent=31 // pred_region
          %s416 = ssub.s32 16, 16
          %417 = vsyncadd %s409, %s416
          %s418 = smul.addr %s24, 16
          %s419 = scalar_lea.hbm %s3, %s418
          %s421 = sshll.u32 %s411, 4
          %s422 = int_to_ptr.vmem [resolvable:$true] %s421
          %424 = dma.vmem_to_hbm [thread:$0]  %s422, 16, %s419, %s409
        $region48: #{tpu_custom_call.1} parent=31 // pred_fallthru
          _
      $region32: #{tpu_custom_call.1} parent=5 // pred_fallthru
        _
      %p425 = scmp.le.s32.totalorder 2, %s15
      // Predicated region
      $region49: #{tpu_custom_call.1} parent=5 // pred_check
        %p426 = pneg %p425
      $region50: #{tpu_custom_call.1} parent=5 // pred_check_branch
        %428 = sbr.rel (%p426) target = $region52
      $region51: #{tpu_custom_call.1} parent=5 // pred_region
        %s429 = ssub.s32 %s15, 2
        // Predicated region
        $region53: #{tpu_custom_call.1} parent=51 // pred_check
          %p430 = pneg %p126
        $region54: #{tpu_custom_call.1} parent=51 // pred_check_branch
          %432 = sbr.rel (%p430) target = $region56
        $region55: #{tpu_custom_call.1} parent=51 // pred_region
          %s433 = sand.u32 %s111, 1
          %s434 = scalar_lea.sflag [#allocation6], %s433
          %s435 = sand.u32 %s111, 1
          %s436 = scalar_lea.vmem [#allocation7], %s435
          %437 = dma.done %s434, 16
        $region56: #{tpu_custom_call.1} parent=51 // pred_fallthru
          _
      $region52: #{tpu_custom_call.1} parent=5 // pred_fallthru
        _
    $region6: #{tpu_custom_call.1} parent=1 // loop_footer
      %s19 = sadd.s32 1, %s15
    $region7: #{tpu_custom_call.1} parent=1 // loop_footer_branch
      %14 = sbr.rel target = $region3
    $region8: #{tpu_custom_call.1} parent=1 // loop_exit
      _
    %438 = vsyncpa [#allocation5], 1
    %s439 = scalar_lea.sflag [#allocation5], 1
    %440 = vsyncpa %s439, 1
    %441 = vsyncpa [#allocation6], 1
    %s442 = scalar_lea.sflag [#allocation6], 1
    %443 = vsyncpa %s442, 1

</llo_original>
